<compile_context>
chip_gen: v7x
topology: tpu7x:2x2x1
jax: 0.10.0
libtpu: 0.0.40
codegen_flags: <defaults>
</compile_context>

<pallas_src>
import functools

import jax
import jax.numpy as jnp
from jax.experimental import pallas as pl
from jax.experimental.pallas import tpu as pltpu

HIDDEN_DIM = 64


def _round_up(n, m):
    return ((n + m - 1) // m) * m


def _actor_kernel(x_ref, w1_ref, b1_ref, w2_ref, b2_ref, out_ref, *, action_bound):
    # Layer 1: Linear (MXU, f32 accumulate) + bias + ReLU (f32 on VPU).
    h = jnp.dot(x_ref[...], w1_ref[...], preferred_element_type=jnp.float32)
    h = jnp.maximum(h + b1_ref[...], 0.0)

    # Layer 2: Linear (cast activation back to the weight dtype so the MXU
    # stays on its bf16 path when bf16 inputs are used) + bias + tanh + scale.
    # Epilogue stays in f32 (v5e VPU/EUP have no bf16 path).
    o = jnp.dot(h.astype(w2_ref.dtype), w2_ref[...],
                preferred_element_type=jnp.float32)
    o = jnp.tanh(o + b2_ref[...]) * action_bound

    # Output tile is the true (Bt, A) width: masked vst is far cheaper than a
    # 32x larger padded writeback for this size.
    out_ref[...] = o.astype(out_ref.dtype)


@functools.partial(jax.jit, static_argnums=(5,),
                   static_argnames=("action_bound", "compute_dtype", "block_batch"))
def actor_forward(x, w1, b1, w2, b2, action_bound, *,
                  compute_dtype=None, block_batch=1024):
    """Batch-tiled Pallas forward. Weights laid out (in_features, out_features)."""
    B, S = x.shape
    H = w1.shape[1]
    A = w2.shape[1]
    cd = jnp.dtype(compute_dtype) if compute_dtype is not None else jnp.dtype(x.dtype)

    # Sub-32-bit dtypes pack two rows per sublane -> (16, lane) minimum tile.
    row_align = 16 if cd.itemsize < 4 else 8

    Bt = min(block_batch, _round_up(B, row_align))
    # v7x has 2 TensorCores: if a large batch would fit in a single tile,
    # split it so the "parallel" grid axis has >= 2 steps.  No-op for small
    # batches; harmless (~0.35us/step) on single-TC v5e/v6e.
    if B > 4 * row_align and _round_up(B, Bt) == Bt:
        Bt = _round_up(pl.cdiv(Bt, 2), row_align)
    Bp = _round_up(B, Bt)

    # Only batch rows are padded (no lane padding anywhere).  Skip entirely
    # when nothing changes; otherwise this is a single fused pad under jit.
    if Bp == B and cd == x.dtype:
        xp = x
    else:
        xp = jnp.zeros((Bp, S), cd).at[:B, :].set(x.astype(cd))

    w1c = w1.astype(cd)
    w2c = w2.astype(cd)
    # Biases stay f32: they are added to the f32 accumulator inside the kernel.
    b1c = b1.astype(jnp.float32).reshape(1, H)
    b2c = b2.astype(jnp.float32).reshape(1, A)

    kernel = functools.partial(_actor_kernel, action_bound=float(action_bound))

    itemsize = cd.itemsize
    cost = pl.CostEstimate(
        flops=2 * Bp * (S * H + H * A),
        transcendentals=Bp * A,
        bytes_accessed=(Bp * S * itemsize              # x in
                        + (S * H + H * A) * itemsize   # weights (resident)
                        + (H + A) * 4                  # biases (f32)
                        + Bp * A * 4),                 # out (f32)
    )

    out_p = pl.pallas_call(
        kernel,
        out_shape=jax.ShapeDtypeStruct((Bp, A), jnp.float32),
        grid_spec=pltpu.PrefetchScalarGridSpec(
            num_scalar_prefetch=0,
            grid=(Bp // Bt,),
            in_specs=[
                pl.BlockSpec((Bt, S), lambda i: (i, 0)),   # x: batch-tiled, true width
                pl.BlockSpec((S, H), lambda i: (0, 0)),    # w1: resident
                pl.BlockSpec((1, H), lambda i: (0, 0)),    # b1: resident
                pl.BlockSpec((H, A), lambda i: (0, 0)),    # w2: resident
                pl.BlockSpec((1, A), lambda i: (0, 0)),    # b2: resident
            ],
            out_specs=pl.BlockSpec((Bt, A), lambda i: (i, 0)),
        ),
        compiler_params=pltpu.CompilerParams(
            dimension_semantics=("parallel",),     # 2nd TC on v7x; no-op v5e/v6e
            vmem_limit_bytes=32 * 1024 * 1024,     # safe on v7x's 64 MiB VMEM
        ),
        cost_estimate=cost,
    )(xp, w1c, b1c, w2c, b2c)

    return out_p if Bp == B else out_p[:B, :]


def init_actor_params(key, state_dim, action_dim, dtype=jnp.float32):
    """PyTorch-style uniform init (U[-1/sqrt(fan_in), 1/sqrt(fan_in)])."""
    k1, k2, k3, k4 = jax.random.split(key, 4)
    bnd1 = 1.0 / jnp.sqrt(state_dim)
    bnd2 = 1.0 / jnp.sqrt(HIDDEN_DIM)
    w1 = jax.random.uniform(k1, (state_dim, HIDDEN_DIM), dtype, -bnd1, bnd1)
    b1 = jax.random.uniform(k2, (1, HIDDEN_DIM), dtype, -bnd1, bnd1)
    w2 = jax.random.uniform(k3, (HIDDEN_DIM, action_dim), dtype, -bnd2, bnd2)
    b2 = jax.random.uniform(k4, (1, action_dim), dtype, -bnd2, bnd2)
    return w1, b1, w2, b2


def actor_ref(x, w1, b1, w2, b2, action_bound):
    """Pure-JAX reference for correctness check."""
    h = jnp.maximum(x @ w1 + b1, 0.0)
    return jnp.tanh(h @ w2 + b2) * action_bound


if __name__ == "__main__":
    key = jax.random.PRNGKey(0)
    k_params, k_x, k_x2, k_x3 = jax.random.split(key, 4)

    batch = 2
    state_dim = 8
    action_dim = 4
    action_bound = 2.0

    w1, b1, w2, b2 = init_actor_params(k_params, state_dim, action_dim)
    x = jax.random.normal(k_x, (batch, state_dim), dtype=jnp.float32)
    ref = actor_ref(x, w1, b1, w2, b2, action_bound)

    # f32 path (tight tolerance).
    out = actor_forward(x, w1, b1, w2, b2, action_bound)
    out = jax.block_until_ready(out)
    assert out.shape == (batch, action_dim)
    assert jnp.allclose(out, ref, atol=1e-5, rtol=1e-5), "f32 mismatch vs reference"

    # bf16 activation/weight path (f32 accumulation, 16-row tile) — loose tol.
    out_bf16 = actor_forward(x, w1, b1, w2, b2, action_bound,
                             compute_dtype=jnp.bfloat16)
    out_bf16 = jax.block_until_ready(out_bf16)
    assert jnp.allclose(out_bf16, ref, atol=5e-2, rtol=5e-2), "bf16 mismatch vs reference"

    # Multi-tile grid path (batch padded/tiled, grid > 1) to exercise pipelining.
    batch2 = 30
    x2 = jax.random.normal(k_x2, (batch2, state_dim), dtype=jnp.float32)
    ref2 = actor_ref(x2, w1, b1, w2, b2, action_bound)
    out2 = actor_forward(x2, w1, b1, w2, b2, action_bound, block_batch=8)
    out2 = jax.block_until_ready(out2)
    assert out2.shape == (batch2, action_dim)
    assert jnp.allclose(out2, ref2, atol=1e-5, rtol=1e-5), "tiled mismatch vs reference"

    # Large-batch path: single-tile batch auto-splits so the grid has >= 2
    # "parallel" steps (both TensorCores on v7x).
    batch3 = 1024
    x3 = jax.random.normal(k_x3, (batch3, state_dim), dtype=jnp.float32)
    ref3 = actor_ref(x3, w1, b1, w2, b2, action_bound)
    out3 = actor_forward(x3, w1, b1, w2, b2, action_bound)
    out3 = jax.block_until_ready(out3)
    assert out3.shape == (batch3, action_dim)
    assert jnp.allclose(out3, ref3, atol=1e-5, rtol=1e-5), "large-batch mismatch vs reference"

    print("KERNEL_OK")
</pallas_src>

<mosaic_0001>
module attributes {stable_mosaic.version = 11 : i64} {
  func.func @_actor_kernel(%arg0: i32, %arg1: memref<8x8xf32, #tpu.memory_space<vmem>>, %arg2: memref<8x64xf32, #tpu.memory_space<vmem>>, %arg3: memref<1x64xf32, #tpu.memory_space<vmem>>, %arg4: memref<64x4xf32, #tpu.memory_space<vmem>>, %arg5: memref<1x4xf32, #tpu.memory_space<vmem>>, %arg6: memref<8x4xf32, #tpu.memory_space<vmem>>) attributes {dimension_semantics = [#tpu.dimension_semantics<parallel>], iteration_bounds = array<i64: 1>, scalar_prefetch = 0 : i64, scratch_operands = 0 : i64, tpu.core_type = #tpu.core_type<tc>, window_params = [{transform_indices = @transform_0, window_bounds = array<i64: 8, 8>}, {pipeline_mode = #tpu.pipeline_mode<synchronous>, transform_indices = @transform_1, window_bounds = array<i64: 8, 64>}, {pipeline_mode = #tpu.pipeline_mode<synchronous>, transform_indices = @transform_2, window_bounds = array<i64: 1, 64>}, {pipeline_mode = #tpu.pipeline_mode<synchronous>, transform_indices = @transform_3, window_bounds = array<i64: 64, 4>}, {pipeline_mode = #tpu.pipeline_mode<synchronous>, transform_indices = @transform_4, window_bounds = array<i64: 1, 4>}, {transform_indices = @transform_5, window_bounds = array<i64: 8, 4>}]} {
    %c0 = arith.constant 0 : index
    %c0_0 = arith.constant 0 : index
    %0 = vector.load %arg1[%c0, %c0_0] : memref<8x8xf32, #tpu.memory_space<vmem>>, vector<8x8xf32>
    %c0_1 = arith.constant 0 : index
    %c0_2 = arith.constant 0 : index
    %1 = vector.load %arg2[%c0_1, %c0_2] : memref<8x64xf32, #tpu.memory_space<vmem>>, vector<8x64xf32>
    %cst = arith.constant dense<0.000000e+00> : vector<8x64xf32>
    %2 = tpu.matmul %0, %1, %cst {dimension_numbers = #tpu.dot_dimension_numbers<[1], [0], [0], [1], [0, 0, 1, 1], [], []>} : vector<8x8xf32>, vector<8x64xf32>, vector<8x64xf32> -> vector<8x64xf32>
    %c0_3 = arith.constant 0 : index
    %c0_4 = arith.constant 0 : index
    %3 = vector.load %arg3[%c0_3, %c0_4] : memref<1x64xf32, #tpu.memory_space<vmem>>, vector<1x64xf32>
    %4 = vector.broadcast %3 : vector<1x64xf32> to vector<8x64xf32>
    %5 = arith.addf %2, %4 : vector<8x64xf32>
    %cst_5 = arith.constant 0.000000e+00 : f32
    %6 = vector.broadcast %cst_5 : f32 to vector<8x64xf32>
    %7 = arith.maximumf %5, %6 : vector<8x64xf32>
    %c0_6 = arith.constant 0 : index
    %c0_7 = arith.constant 0 : index
    %8 = vector.load %arg4[%c0_6, %c0_7] : memref<64x4xf32, #tpu.memory_space<vmem>>, vector<64x4xf32>
    %cst_8 = arith.constant dense<0.000000e+00> : vector<8x4xf32>
    %9 = tpu.matmul %7, %8, %cst_8 {dimension_numbers = #tpu.dot_dimension_numbers<[1], [0], [0], [1], [0, 0, 1, 1], [], []>} : vector<8x64xf32>, vector<64x4xf32>, vector<8x4xf32> -> vector<8x4xf32>
    %c0_9 = arith.constant 0 : index
    %c0_10 = arith.constant 0 : index
    %10 = vector.load %arg5[%c0_9, %c0_10] : memref<1x4xf32, #tpu.memory_space<vmem>>, vector<1x4xf32>
    %11 = vector.broadcast %10 : vector<1x4xf32> to vector<8x4xf32>
    %12 = arith.addf %9, %11 : vector<8x4xf32>
    %13 = math.tanh %12 : vector<8x4xf32>
    %cst_11 = arith.constant 2.000000e+00 : f32
    %14 = vector.broadcast %cst_11 : f32 to vector<8x4xf32>
    %15 = arith.mulf %13, %14 : vector<8x4xf32>
    %c0_12 = arith.constant 0 : index
    %c0_13 = arith.constant 0 : index
    %16 = vector.load %arg6[%c0_12, %c0_13] : memref<8x4xf32, #tpu.memory_space<vmem>>, vector<8x4xf32>
    tpu.vector_store %arg6[%c0_12, %c0_13], %15 {strides = array<i32>} : memref<8x4xf32, #tpu.memory_space<vmem>>, vector<8x4xf32>,
    return
  }
  func.func @transform_0(%arg0: i32) -> (i32, i32) {
    %c0_i32 = arith.constant 0 : i32
    %c0_i32_0 = arith.constant 0 : i32
    return %arg0, %c0_i32 : i32, i32
  }
  func.func @transform_1(%arg0: i32) -> (i32, i32) {
    %c0_i32 = arith.constant 0 : i32
    %c0_i32_0 = arith.constant 0 : i32
    %c0_i32_1 = arith.constant 0 : i32
    return %c0_i32, %c0_i32_0 : i32, i32
  }
  func.func @transform_2(%arg0: i32) -> (i32, i32) {
    %c0_i32 = arith.constant 0 : i32
    %c0_i32_0 = arith.constant 0 : i32
    %c0_i32_1 = arith.constant 0 : i32
    return %c0_i32, %c0_i32_0 : i32, i32
  }
  func.func @transform_3(%arg0: i32) -> (i32, i32) {
    %c0_i32 = arith.constant 0 : i32
    %c0_i32_0 = arith.constant 0 : i32
    %c0_i32_1 = arith.constant 0 : i32
    return %c0_i32, %c0_i32_0 : i32, i32
  }
  func.func @transform_4(%arg0: i32) -> (i32, i32) {
    %c0_i32 = arith.constant 0 : i32
    %c0_i32_0 = arith.constant 0 : i32
    %c0_i32_1 = arith.constant 0 : i32
    return %c0_i32, %c0_i32_0 : i32, i32
  }
  func.func @transform_5(%arg0: i32) -> (i32, i32) {
    %c0_i32 = arith.constant 0 : i32
    %c0_i32_0 = arith.constant 0 : i32
    return %arg0, %c0_i32 : i32, i32
  }
}

</mosaic_0001>

<llo_original>
// kernel: actor_forward.1
$region0: #{actor_forward.1}
  #allocation0 [shape = 'u32[]', space=smem, size = 0x4, offset = 0x4, fixed_abs, tag = 'smem constant byte address 0x4 - core index']
  #allocation1 [shape = 'u32[144,128]{1,0:T(1,128)}', space=vmem, size = 0x12000, scoped, tag = 'internal scratch']
  %s0 = inlined_call_operand.vmem [shape: f32[8,8], index: 0, kind: input, shape index: {}]
  %s1 = inlined_call_operand.vmem [shape: f32[8,64], index: 1, kind: input, shape index: {}]
  %s2 = inlined_call_operand.vmem [shape: f32[1,64], index: 2, kind: input, shape index: {}]
  %s3 = inlined_call_operand.vmem [shape: f32[64,4], index: 3, kind: input, shape index: {}]
  %s4 = inlined_call_operand.vmem [shape: f32[1,4], index: 4, kind: input, shape index: {}]
  %s5 = inlined_call_operand.vmem [shape: f32[8,4], index: 5, kind: output, shape index: {}]
  %s6 = sld [smem:[#allocation0]]
  $region30: #{actor_forward.1} parent=0
    _
  %s8 = ssub.s32 1, %s6
  %s9 = scalar_select 0, %s8, %s6
  // Predicated region
  $region2: #{actor_forward.1} parent=0 // pred_check
    _
  $region3: #{actor_forward.1} parent=0 // pred_check_branch
    %11 = sbr.rel (0) target = $region5
  $region4: #{actor_forward.1} parent=0 // pred_region
    _
  $region5: #{actor_forward.1} parent=0 // pred_fallthru
    _
  // Predicated region
  $region6: #{actor_forward.1} parent=0 // pred_check
    _
  $region7: #{actor_forward.1} parent=0 // pred_check_branch
    %13 = sbr.rel (0) target = $region9
  $region8: #{actor_forward.1} parent=0 // pred_region
    _
  $region9: #{actor_forward.1} parent=0 // pred_fallthru
    _
  // Predicated region
  $region10: #{actor_forward.1} parent=0 // pred_check
    _
  $region11: #{actor_forward.1} parent=0 // pred_check_branch
    %15 = sbr.rel (0) target = $region13
  $region12: #{actor_forward.1} parent=0 // pred_region
    _
  $region13: #{actor_forward.1} parent=0 // pred_fallthru
    _
  // Predicated region
  $region14: #{actor_forward.1} parent=0 // pred_check
    _
  $region15: #{actor_forward.1} parent=0 // pred_check_branch
    %17 = sbr.rel (0) target = $region17
  $region16: #{actor_forward.1} parent=0 // pred_region
    _
  $region17: #{actor_forward.1} parent=0 // pred_fallthru
    _
  // Predicated region
  $region18: #{actor_forward.1} parent=0 // pred_check
    _
  $region19: #{actor_forward.1} parent=0 // pred_check_branch
    %19 = sbr.rel (0) target = $region21
  $region20: #{actor_forward.1} parent=0 // pred_region
    _
  $region21: #{actor_forward.1} parent=0 // pred_fallthru
    _
  %v20 = vld [vmem:[%s0] sm:$0xff]
  %v21 = vld [vmem:[%s1] sm:$0xff]
  %v22 = vld [vmem:[%s2] sm:$0x1]
  %v24 = vlaneseq
  %v25 = vshrl.u32 %v24, 7
  %v26 = vsub.s32 0, %v25
  %v27 = vrot.slane %v22, %v26
  %vm29 = vcmask 64512
  %v31 = vsel %vm29, %v20, 0
  %33 = vmatprep.subr.mxu0 0.0
  %34 = vmatpush1.msra.mxu0 %v21
  %35 = vmatprep.subr.mxu0 0.0
  %36 = vmatpush1.msra.mxu0 0.0
  %37 = vmatprep.subr.mxu0 0.0
  %38 = vmatpush1.msra.mxu0 0.0
  %39 = vmatprep.subr.mxu0 0.0
  %40 = vmatpush1.msra.mxu0 0.0
  %41 = vmatprep.subr.mxu0 0.0
  %42 = vmatpush1.msra.mxu0 0.0
  %43 = vmatprep.subr.mxu0 0.0
  %44 = vmatpush1.msra.mxu0 0.0
  %45 = vmatprep.subr.mxu0 0.0
  %46 = vmatpush1.msra.mxu0 0.0
  %47 = vmatprep.subr.mxu0 0.0
  %48 = vmatpush1.msra.mxu0 0.0
  %49 = vmatprep.subr.mxu0 0.0
  %50 = vmatpush1.msra.mxu0 0.0
  %51 = vmatprep.subr.mxu0 0.0
  %52 = vmatpush1.msra.mxu0 0.0
  %53 = vmatprep.subr.mxu0 0.0
  %54 = vmatpush1.msra.mxu0 0.0
  %55 = vmatprep.subr.mxu0 0.0
  %56 = vmatpush1.msra.mxu0 0.0
  %57 = vmatprep.subr.mxu0 0.0
  %58 = vmatpush1.msra.mxu0 0.0
  %59 = vmatprep.subr.mxu0 0.0
  %60 = vmatpush1.msra.mxu0 0.0
  %61 = vmatprep.subr.mxu0 0.0
  %62 = vmatpush1.msra.mxu0 0.0
  %63 = vmatprep.subr.mxu0 0.0
  %64 = vmatpush1.msra.mxu0 0.0
  %65 = vmatprep.subr.mxu0 0.0
  %66 = vmatpush1.msra.mxu0 0.0
  %67 = vmatprep.subr.mxu0 0.0
  %68 = vmatpush1.msra.mxu0 0.0
  %69 = vmatprep.subr.mxu0 0.0
  %70 = vmatpush1.msra.mxu0 0.0
  %71 = vmatprep.subr.mxu0 0.0
  %72 = vmatpush1.msra.mxu0 0.0
  %73 = vmatprep.subr.mxu0 0.0
  %74 = vmatpush1.msra.mxu0 0.0
  %75 = vmatprep.subr.mxu0 0.0
  %76 = vmatpush1.msra.mxu0 0.0
  %77 = vmatprep.subr.mxu0 0.0
  %78 = vmatpush1.msra.mxu0 0.0
  %79 = vmatprep.subr.mxu0 0.0
  %80 = vmatpush1.msra.mxu0 0.0
  %81 = vmatprep.subr.mxu0 0.0
  %82 = vmatpush1.msra.mxu0 0.0
  %83 = vmatprep.subr.mxu0 0.0
  %84 = vmatpush1.msra.mxu0 0.0
  %85 = vmatprep.subr.mxu0 0.0
  %86 = vmatpush1.msra.mxu0 0.0
  %87 = vmatprep.subr.mxu0 0.0
  %88 = vmatpush1.msra.mxu0 0.0
  %89 = vmatprep.subr.mxu0 0.0
  %90 = vmatpush1.msra.mxu0 0.0
  %91 = vmatprep.subr.mxu0 0.0
  %92 = vmatpush1.msra.mxu0 0.0
  %93 = vmatprep.subr.mxu0 0.0
  %94 = vmatpush1.msra.mxu0 0.0
  %95 = vmatprep.subr.mxu0 0.0
  %96 = vmatpush1.msra.mxu0 0.0
  %97 = vmatprep.mubr.f32.mxu0 0.0
  %98 = vmatmul.mubr.f32.gmra.mrb[0].mxu0 %v31
  %v99 = vpop.f32.mrb[0].mxu0
  %v100 = vadd.f32 %v27, %v99
  %v101 = vpop.f32.mrb[0].mxu0
  %102 = vdwg.mxu0
  %v103 = vmax.f32 %v100, 0.0
  %v104 = vld [vmem:[%s3] sm:$0xff]
  %v105 = vld [vmem:[%s3 + $0x8] sm:$0xff]
  %v106 = vld [vmem:[%s3 + $0x10] sm:$0xff]
  %v107 = vld [vmem:[%s3 + $0x18] sm:$0xff]
  %v108 = vld [vmem:[%s3 + $0x20] sm:$0xff]
  %v109 = vld [vmem:[%s3 + $0x28] sm:$0xff]
  %v110 = vld [vmem:[%s3 + $0x30] sm:$0xff]
  %v111 = vld [vmem:[%s3 + $0x38] sm:$0xff]
  %v112 = vld [vmem:[%s4] sm:$0x1]
  %v114 = vlaneseq
  %v115 = vshrl.u32 %v114, 7
  %v116 = vsub.s32 0, %v115
  %v117 = vrot.slane %v112, %v116
  %vm119 = vcmask 523264
  %v121 = vsel %vm119, %v103, 0
  %123 = vmatprep.subr.mxu0 0.0
  %124 = vmatpush1.msra.mxu0 %v104
  %125 = vmatprep.subr.mxu0 0.0
  %126 = vmatpush1.msra.mxu0 %v105
  %127 = vmatprep.subr.mxu0 0.0
  %128 = vmatpush1.msra.mxu0 %v106
  %129 = vmatprep.subr.mxu0 0.0
  %130 = vmatpush1.msra.mxu0 %v107
  %131 = vmatprep.subr.mxu0 0.0
  %132 = vmatpush1.msra.mxu0 %v108
  %133 = vmatprep.subr.mxu0 0.0
  %134 = vmatpush1.msra.mxu0 %v109
  %135 = vmatprep.subr.mxu0 0.0
  %136 = vmatpush1.msra.mxu0 %v110
  %137 = vmatprep.subr.mxu0 0.0
  %138 = vmatpush1.msra.mxu0 %v111
  %139 = vmatprep.subr.mxu0 0.0
  %140 = vmatpush1.msra.mxu0 0.0
  %141 = vmatprep.subr.mxu0 0.0
  %142 = vmatpush1.msra.mxu0 0.0
  %143 = vmatprep.subr.mxu0 0.0
  %144 = vmatpush1.msra.mxu0 0.0
  %145 = vmatprep.subr.mxu0 0.0
  %146 = vmatpush1.msra.mxu0 0.0
  %147 = vmatprep.subr.mxu0 0.0
  %148 = vmatpush1.msra.mxu0 0.0
  %149 = vmatprep.subr.mxu0 0.0
  %150 = vmatpush1.msra.mxu0 0.0
  %151 = vmatprep.subr.mxu0 0.0
  %152 = vmatpush1.msra.mxu0 0.0
  %153 = vmatprep.subr.mxu0 0.0
  %154 = vmatpush1.msra.mxu0 0.0
  %155 = vmatprep.subr.mxu0 0.0
  %156 = vmatpush1.msra.mxu0 0.0
  %157 = vmatprep.subr.mxu0 0.0
  %158 = vmatpush1.msra.mxu0 0.0
  %159 = vmatprep.subr.mxu0 0.0
  %160 = vmatpush1.msra.mxu0 0.0
  %161 = vmatprep.subr.mxu0 0.0
  %162 = vmatpush1.msra.mxu0 0.0
  %163 = vmatprep.subr.mxu0 0.0
  %164 = vmatpush1.msra.mxu0 0.0
  %165 = vmatprep.subr.mxu0 0.0
  %166 = vmatpush1.msra.mxu0 0.0
  %167 = vmatprep.subr.mxu0 0.0
  %168 = vmatpush1.msra.mxu0 0.0
  %169 = vmatprep.subr.mxu0 0.0
  %170 = vmatpush1.msra.mxu0 0.0
  %171 = vmatprep.subr.mxu0 0.0
  %172 = vmatpush1.msra.mxu0 0.0
  %173 = vmatprep.subr.mxu0 0.0
  %174 = vmatpush1.msra.mxu0 0.0
  %175 = vmatprep.subr.mxu0 0.0
  %176 = vmatpush1.msra.mxu0 0.0
  %177 = vmatprep.subr.mxu0 0.0
  %178 = vmatpush1.msra.mxu0 0.0
  %179 = vmatprep.subr.mxu0 0.0
  %180 = vmatpush1.msra.mxu0 0.0
  %181 = vmatprep.subr.mxu0 0.0
  %182 = vmatpush1.msra.mxu0 0.0
  %183 = vmatprep.subr.mxu0 0.0
  %184 = vmatpush1.msra.mxu0 0.0
  %185 = vmatprep.subr.mxu0 0.0
  %186 = vmatpush1.msra.mxu0 0.0
  %187 = vmatprep.mubr.f32.mxu0 0.0
  %188 = vmatmul.mubr.f32.gmra.mrb[0].mxu0 %v121
  %v189 = vpop.f32.mrb[0].mxu0
  %v190 = vadd.f32 %v117, %v189
  %v191 = vpop.f32.mrb[0].mxu0
  %192 = vdwg.mxu0
  %v193 = vtanh.pop %v190
  %v194 = vmul.f32 %v193, 2.0
  %vm195 = vcmask 31744
  %196 = vst.msk [vmem:[%s5] sm:$0xff] %vm195, %v194
  // Predicated region
  $region22: #{actor_forward.1} parent=0 // pred_check
    _
  $region23: #{actor_forward.1} parent=0 // pred_check_branch
    %198 = sbr.rel (0) target = $region25
  $region24: #{actor_forward.1} parent=0 // pred_region
    _
  $region25: #{actor_forward.1} parent=0 // pred_fallthru
    _
  // Predicated region
  $region26: #{actor_forward.1} parent=0 // pred_check
    _
  $region27: #{actor_forward.1} parent=0 // pred_check_branch
    %200 = sbr.rel (0) target = $region29
  $region28: #{actor_forward.1} parent=0 // pred_region
    _
  $region29: #{actor_forward.1} parent=0 // pred_fallthru
    _

</llo_original>
